<compile_context>
chip_gen: v5e
topology: v5e:2x2
jax: 0.10.0
libtpu: 0.0.40
codegen_flags: <defaults>
</compile_context>

<pallas_src>
import jax
import jax.numpy as jnp
from jax.experimental import pallas as pl
from jax.experimental.pallas import tpu as pltpu

_GN_EPS = 1e-5  # PyTorch GroupNorm default eps


def _gelu_tanh(x):
    # tanh-approx GELU (PyTorch nn.GELU default is erf-exact; delta < 1e-3).
    c = jnp.float32(0.7978845608028654)  # sqrt(2/pi)
    return 0.5 * x * (1.0 + jnp.tanh(c * (x + 0.044715 * x * x * x)))


def _norm_mixer_act_kernel(x_ref, scale_ref, shift_ref, w1_ref, b1_ref,
                           w2_ref, b2_ref, ls_ref, o_ref):
    # x_ref block: (1, C, T) -- one sample's channel slab, HW tile on the lane axis.
    x = x_ref[0]                                             # (C, T), input dtype

    # ---- GroupNorm(num_groups=1): stats precomputed per sample in the wrapper.
    # xn = (x - mean) * rstd * gamma + beta  ==  x * scale + shift   (f32 math)
    xn = x.astype(jnp.float32) * scale_ref[0] + shift_ref[0]   # (C, T) f32

    # ---- channel MLP mixer: fc1 -> GELU -> fc2 (1x1 convs == channel matmuls).
    # bf16 operands, f32 accumulation on the MXU; HW stays on the lane (N) axis.
    h = jnp.dot(w1_ref[...], xn.astype(jnp.bfloat16),
                preferred_element_type=jnp.float32) + b1_ref[...]      # (Ch, T) f32
    h = _gelu_tanh(h)
    y = jnp.dot(w2_ref[...], h.astype(jnp.bfloat16),
                preferred_element_type=jnp.float32) + b2_ref[...]      # (C, T) f32

    # ---- act slot of the micro-arch string.
    y = _gelu_tanh(y)

    # ---- layer scale (per-channel); drop_path is Identity (p = 0.0).
    y = y * ls_ref[...]

    o_ref[0] = y.astype(o_ref.dtype)                         # lane-dense store


def _pick_hw_tile(HW, C, Ch, budget_bytes=8 * 1024 * 1024):
    """Largest HW tile (multiple of 128 dividing HW, or HW itself) within a VMEM budget."""
    # Rough f32 bytes per lane column: double-buffered in/out x-tiles + xn + h (+ bf16 copies).
    bytes_per_col = 4 * (6 * C + 2 * Ch)
    cap = max(128, budget_bytes // bytes_per_col)
    if HW <= cap:
        return HW
    best = 0
    for t in range(128, int(cap) + 1, 128):
        if HW % t == 0:
            best = t
    if best > 0:
        return best
    # No dividing multiple-of-128 tile: use a ragged multiple-of-128 tile (Pallas masks
    # the out-of-bounds lanes; the kernel has no cross-lane reduction, so this is safe).
    return max(128, (int(cap) // 128) * 128)


def norm_mixer_act_block(x_nchw, params):
    """Fused NormMixerActBlock forward.

    Args:
      x_nchw: (N, C, H, W) input.
      params: dict with gamma/beta (C,), w1 (Ch, C), b1 (Ch,), w2 (C, Ch), b2 (C,),
              layer_scale (C,).  w1/w2 follow PyTorch Conv2d (out, in) convention.
    Returns:
      (N, C, H, W) output, same dtype as the input.
    """
    N, C, H, W = x_nchw.shape
    HW = H * W
    Ch = params["w1"].shape[0]

    # Free reshape (no transpose): channels on sublanes, HW on the lane axis.
    x = x_nchw.reshape(N, C, HW)

    # ---- GroupNorm stats prepass (per-sample mean/rstd, f32, biased variance).
    x32 = x.astype(jnp.float32)
    mean = jnp.mean(x32, axis=(1, 2))                                        # (N,)
    var = jnp.mean(jnp.square(x32 - mean[:, None, None]), axis=(1, 2))       # (N,)
    rstd = jax.lax.rsqrt(var + _GN_EPS)                                      # (N,)
    gamma = params["gamma"].astype(jnp.float32)
    beta = params["beta"].astype(jnp.float32)
    scale = (rstd[:, None] * gamma[None, :]).reshape(N, C, 1)                # (N, C, 1)
    shift = (beta[None, :] - mean[:, None] * rstd[:, None] * gamma[None, :]).reshape(N, C, 1)

    # Ship weights bf16 for the MXU; keep biases / per-channel vectors f32.
    w1 = params["w1"].astype(jnp.bfloat16)                   # (Ch, C)
    w2 = params["w2"].astype(jnp.bfloat16)                   # (C, Ch)
    b1 = params["b1"].astype(jnp.float32).reshape(Ch, 1)
    b2 = params["b2"].astype(jnp.float32).reshape(C, 1)
    ls = params["layer_scale"].astype(jnp.float32).reshape(C, 1)

    T = _pick_hw_tile(HW, C, Ch)
    grid = (N, pl.cdiv(HW, T))

    const = lambda n, t: (0, 0)       # resident parameters: single block across the grid

    out = pl.pallas_call(
        _norm_mixer_act_kernel,
        out_shape=jax.ShapeDtypeStruct((N, C, HW), x_nchw.dtype),
        grid=grid,
        in_specs=[
            pl.BlockSpec((1, C, T), lambda n, t: (n, 0, t)),   # x tile
            pl.BlockSpec((1, C, 1), lambda n, t: (n, 0, 0)),   # per-sample norm scale
            pl.BlockSpec((1, C, 1), lambda n, t: (n, 0, 0)),   # per-sample norm shift
            pl.BlockSpec((Ch, C), const),                      # w1 (fc1 weight, bf16)
            pl.BlockSpec((Ch, 1), const),                      # b1
            pl.BlockSpec((C, Ch), const),                      # w2 (fc2 weight, bf16)
            pl.BlockSpec((C, 1), const),                       # b2
            pl.BlockSpec((C, 1), const),                       # layer_scale
        ],
        out_specs=pl.BlockSpec((1, C, T), lambda n, t: (n, 0, t)),
        compiler_params=pltpu.CompilerParams(
            dimension_semantics=("parallel", "parallel"),
            vmem_limit_bytes=48 * 1024 * 1024),
    )(x, scale, shift, w1, b1, w2, b2, ls)

    return out.reshape(N, C, H, W)


def norm_mixer_act_reference(x_nchw, params):
    """Pure-JAX f32 reference with the module's math (for the correctness check)."""
    x = x_nchw.astype(jnp.float32)
    mean = jnp.mean(x, axis=(1, 2, 3), keepdims=True)
    var = jnp.mean(jnp.square(x - mean), axis=(1, 2, 3), keepdims=True)
    xn = (x - mean) * jax.lax.rsqrt(var + _GN_EPS)
    xn = xn * params["gamma"][None, :, None, None] + params["beta"][None, :, None, None]
    h = jnp.einsum("nchw,dc->ndhw", xn, params["w1"].astype(jnp.float32))
    h = h + params["b1"][None, :, None, None]
    h = _gelu_tanh(h)
    y = jnp.einsum("ndhw,cd->nchw", h, params["w2"].astype(jnp.float32))
    y = y + params["b2"][None, :, None, None]
    y = _gelu_tanh(y)
    y = y * params["layer_scale"][None, :, None, None]
    return y.astype(x_nchw.dtype)


if __name__ == "__main__":
    key = jax.random.PRNGKey(0)
    N, C, H, W = 2, 4, 16, 16          # batch=2, channels=4, spatial=16x16
    mlp_ratio = 4
    Ch = mlp_ratio * C

    ks = jax.random.split(key, 7)
    x = jax.random.normal(ks[0], (N, C, H, W), dtype=jnp.float32)
    params = {
        "gamma": 1.0 + 0.1 * jax.random.normal(ks[1], (C,), jnp.float32),
        "beta": 0.1 * jax.random.normal(ks[2], (C,), jnp.float32),
        # PyTorch Conv2d weight convention: (out_channels, in_channels)
        "w1": jax.random.normal(ks[3], (Ch, C), jnp.float32) / (C ** 0.5),
        "b1": 0.1 * jax.random.normal(ks[4], (Ch,), jnp.float32),
        "w2": jax.random.normal(ks[5], (C, Ch), jnp.float32) / (Ch ** 0.5),
        "b2": 0.1 * jax.random.normal(ks[6], (C,), jnp.float32),
        "layer_scale": 1e-5 * jnp.ones((C,), jnp.float32),
    }

    out = jax.block_until_ready(norm_mixer_act_block(x, params))
    ref = jax.block_until_ready(norm_mixer_act_reference(x, params))

    assert out.shape == x.shape
    assert out.dtype == x.dtype
    max_err = float(jnp.max(jnp.abs(out.astype(jnp.float32) - ref.astype(jnp.float32))))
    max_ref = float(jnp.max(jnp.abs(ref))) + 1e-12
    # kernel uses bf16 MXU operands (f32 accumulation) -> allow ~2-3% of the output scale
    assert max_err <= 3e-2 * max_ref + 1e-7, f"mismatch: {max_err} vs scale {max_ref}"

    print("KERNEL_OK")
</pallas_src>

<mosaic_0001>
module attributes {stable_mosaic.version = 11 : i64} {
  func.func @_norm_mixer_act_kernel(%arg0: i32, %arg1: i32, %arg2: memref<1x4x256xf32, #tpu.memory_space<vmem>>, %arg3: memref<1x4x1xf32, #tpu.memory_space<vmem>>, %arg4: memref<1x4x1xf32, #tpu.memory_space<vmem>>, %arg5: memref<16x4xbf16, #tpu.memory_space<vmem>>, %arg6: memref<16x1xf32, #tpu.memory_space<vmem>>, %arg7: memref<4x16xbf16, #tpu.memory_space<vmem>>, %arg8: memref<4x1xf32, #tpu.memory_space<vmem>>, %arg9: memref<4x1xf32, #tpu.memory_space<vmem>>, %arg10: memref<1x4x256xf32, #tpu.memory_space<vmem>>) attributes {dimension_semantics = [#tpu.dimension_semantics<parallel>, #tpu.dimension_semantics<parallel>], iteration_bounds = array<i64: 2, 1>, scalar_prefetch = 0 : i64, scratch_operands = 0 : i64, tpu.core_type = #tpu.core_type<tc>, window_params = [{transform_indices = @transform_0, window_bounds = array<i64: 1, 4, 256>}, {transform_indices = @transform_1, window_bounds = array<i64: 1, 4, 1>}, {transform_indices = @transform_2, window_bounds = array<i64: 1, 4, 1>}, {pipeline_mode = #tpu.pipeline_mode<synchronous>, transform_indices = @transform_3, window_bounds = array<i64: 16, 4>}, {pipeline_mode = #tpu.pipeline_mode<synchronous>, transform_indices = @transform_4, window_bounds = array<i64: 16, 1>}, {pipeline_mode = #tpu.pipeline_mode<synchronous>, transform_indices = @transform_5, window_bounds = array<i64: 4, 16>}, {pipeline_mode = #tpu.pipeline_mode<synchronous>, transform_indices = @transform_6, window_bounds = array<i64: 4, 1>}, {pipeline_mode = #tpu.pipeline_mode<synchronous>, transform_indices = @transform_7, window_bounds = array<i64: 4, 1>}, {transform_indices = @transform_8, window_bounds = array<i64: 1, 4, 256>}]} {
    %c0 = arith.constant 0 : index
    %c0_0 = arith.constant 0 : index
    %c0_1 = arith.constant 0 : index
    %0 = vector.load %arg2[%c0, %c0_0, %c0_1] : memref<1x4x256xf32, #tpu.memory_space<vmem>>, vector<1x4x256xf32>
    %1 = vector.shape_cast %0 : vector<1x4x256xf32> to vector<4x256xf32>
    %c0_2 = arith.constant 0 : index
    %c0_3 = arith.constant 0 : index
    %c0_4 = arith.constant 0 : index
    %2 = vector.load %arg3[%c0_2, %c0_3, %c0_4] : memref<1x4x1xf32, #tpu.memory_space<vmem>>, vector<1x4x1xf32>
    %3 = vector.shape_cast %2 : vector<1x4x1xf32> to vector<4x1xf32>
    %4 = vector.broadcast %3 : vector<4x1xf32> to vector<4x256xf32>
    %5 = arith.mulf %1, %4 : vector<4x256xf32>
    %c0_5 = arith.constant 0 : index
    %c0_6 = arith.constant 0 : index
    %c0_7 = arith.constant 0 : index
    %6 = vector.load %arg4[%c0_5, %c0_6, %c0_7] : memref<1x4x1xf32, #tpu.memory_space<vmem>>, vector<1x4x1xf32>
    %7 = vector.shape_cast %6 : vector<1x4x1xf32> to vector<4x1xf32>
    %8 = vector.broadcast %7 : vector<4x1xf32> to vector<4x256xf32>
    %9 = arith.addf %5, %8 : vector<4x256xf32>
    %c0_8 = arith.constant 0 : index
    %c0_9 = arith.constant 0 : index
    %10 = vector.load %arg5[%c0_8, %c0_9] : memref<16x4xbf16, #tpu.memory_space<vmem>>, vector<16x4xbf16>
    %11 = arith.truncf %9 : vector<4x256xf32> to vector<4x256xbf16>
    %cst = arith.constant dense<0.000000e+00> : vector<16x256xf32>
    %12 = tpu.matmul %10, %11, %cst {dimension_numbers = #tpu.dot_dimension_numbers<[1], [0], [0], [1], [0, 0, 1, 1], [], []>} : vector<16x4xbf16>, vector<4x256xbf16>, vector<16x256xf32> -> vector<16x256xf32>
    %c0_10 = arith.constant 0 : index
    %c0_11 = arith.constant 0 : index
    %13 = vector.load %arg6[%c0_10, %c0_11] : memref<16x1xf32, #tpu.memory_space<vmem>>, vector<16x1xf32>
    %14 = vector.broadcast %13 : vector<16x1xf32> to vector<16x256xf32>
    %15 = arith.addf %12, %14 : vector<16x256xf32>
    %cst_12 = arith.constant 5.000000e-01 : f32
    %16 = vector.broadcast %cst_12 : f32 to vector<16x256xf32>
    %17 = arith.mulf %16, %15 : vector<16x256xf32>
    %cst_13 = arith.constant 4.471500e-02 : f32
    %18 = vector.broadcast %cst_13 : f32 to vector<16x256xf32>
    %19 = arith.mulf %18, %15 : vector<16x256xf32>
    %20 = arith.mulf %19, %15 : vector<16x256xf32>
    %21 = arith.mulf %20, %15 : vector<16x256xf32>
    %22 = arith.addf %15, %21 : vector<16x256xf32>
    %cst_14 = arith.constant 0.797884583 : f32
    %23 = vector.broadcast %cst_14 : f32 to vector<16x256xf32>
    %24 = arith.mulf %23, %22 : vector<16x256xf32>
    %25 = math.tanh %24 : vector<16x256xf32>
    %cst_15 = arith.constant 1.000000e+00 : f32
    %26 = vector.broadcast %cst_15 : f32 to vector<16x256xf32>
    %27 = arith.addf %26, %25 : vector<16x256xf32>
    %28 = arith.mulf %17, %27 : vector<16x256xf32>
    %c0_16 = arith.constant 0 : index
    %c0_17 = arith.constant 0 : index
    %29 = vector.load %arg7[%c0_16, %c0_17] : memref<4x16xbf16, #tpu.memory_space<vmem>>, vector<4x16xbf16>
    %30 = arith.truncf %28 : vector<16x256xf32> to vector<16x256xbf16>
    %cst_18 = arith.constant dense<0.000000e+00> : vector<4x256xf32>
    %31 = tpu.matmul %29, %30, %cst_18 {dimension_numbers = #tpu.dot_dimension_numbers<[1], [0], [0], [1], [0, 0, 1, 1], [], []>} : vector<4x16xbf16>, vector<16x256xbf16>, vector<4x256xf32> -> vector<4x256xf32>
    %c0_19 = arith.constant 0 : index
    %c0_20 = arith.constant 0 : index
    %32 = vector.load %arg8[%c0_19, %c0_20] : memref<4x1xf32, #tpu.memory_space<vmem>>, vector<4x1xf32>
    %33 = vector.broadcast %32 : vector<4x1xf32> to vector<4x256xf32>
    %34 = arith.addf %31, %33 : vector<4x256xf32>
    %cst_21 = arith.constant 5.000000e-01 : f32
    %35 = vector.broadcast %cst_21 : f32 to vector<4x256xf32>
    %36 = arith.mulf %35, %34 : vector<4x256xf32>
    %cst_22 = arith.constant 4.471500e-02 : f32
    %37 = vector.broadcast %cst_22 : f32 to vector<4x256xf32>
    %38 = arith.mulf %37, %34 : vector<4x256xf32>
    %39 = arith.mulf %38, %34 : vector<4x256xf32>
    %40 = arith.mulf %39, %34 : vector<4x256xf32>
    %41 = arith.addf %34, %40 : vector<4x256xf32>
    %cst_23 = arith.constant 0.797884583 : f32
    %42 = vector.broadcast %cst_23 : f32 to vector<4x256xf32>
    %43 = arith.mulf %42, %41 : vector<4x256xf32>
    %44 = math.tanh %43 : vector<4x256xf32>
    %cst_24 = arith.constant 1.000000e+00 : f32
    %45 = vector.broadcast %cst_24 : f32 to vector<4x256xf32>
    %46 = arith.addf %45, %44 : vector<4x256xf32>
    %47 = arith.mulf %36, %46 : vector<4x256xf32>
    %c0_25 = arith.constant 0 : index
    %c0_26 = arith.constant 0 : index
    %48 = vector.load %arg9[%c0_25, %c0_26] : memref<4x1xf32, #tpu.memory_space<vmem>>, vector<4x1xf32>
    %49 = vector.broadcast %48 : vector<4x1xf32> to vector<4x256xf32>
    %50 = arith.mulf %47, %49 : vector<4x256xf32>
    %c0_27 = arith.constant 0 : index
    %c0_28 = arith.constant 0 : index
    %c0_29 = arith.constant 0 : index
    %51 = vector.load %arg10[%c0_27, %c0_28, %c0_29] : memref<1x4x256xf32, #tpu.memory_space<vmem>>, vector<1x4x256xf32>
    %52 = vector.shape_cast %51 : vector<1x4x256xf32> to vector<4x256xf32>
    %53 = vector.shape_cast %50 : vector<4x256xf32> to vector<1x4x256xf32>
    tpu.vector_store %arg10[%c0_27, %c0_28, %c0_29], %53 {strides = array<i32>} : memref<1x4x256xf32, #tpu.memory_space<vmem>>, vector<1x4x256xf32>,
    return
  }
  func.func @transform_0(%arg0: i32, %arg1: i32) -> (i32, i32, i32) {
    %c0_i32 = arith.constant 0 : i32
    %c0_i32_0 = arith.constant 0 : i32
    return %arg0, %c0_i32, %arg1 : i32, i32, i32
  }
  func.func @transform_1(%arg0: i32, %arg1: i32) -> (i32, i32, i32) {
    %c0_i32 = arith.constant 0 : i32
    %c0_i32_0 = arith.constant 0 : i32
    %c0_i32_1 = arith.constant 0 : i32
    return %arg0, %c0_i32, %c0_i32_0 : i32, i32, i32
  }
  func.func @transform_2(%arg0: i32, %arg1: i32) -> (i32, i32, i32) {
    %c0_i32 = arith.constant 0 : i32
    %c0_i32_0 = arith.constant 0 : i32
    %c0_i32_1 = arith.constant 0 : i32
    return %arg0, %c0_i32, %c0_i32_0 : i32, i32, i32
  }
  func.func @transform_3(%arg0: i32, %arg1: i32) -> (i32, i32) {
    %c0_i32 = arith.constant 0 : i32
    %c0_i32_0 = arith.constant 0 : i32
    %c0_i32_1 = arith.constant 0 : i32
    return %c0_i32, %c0_i32_0 : i32, i32
  }
  func.func @transform_4(%arg0: i32, %arg1: i32) -> (i32, i32) {
    %c0_i32 = arith.constant 0 : i32
    %c0_i32_0 = arith.constant 0 : i32
    %c0_i32_1 = arith.constant 0 : i32
    return %c0_i32, %c0_i32_0 : i32, i32
  }
  func.func @transform_5(%arg0: i32, %arg1: i32) -> (i32, i32) {
    %c0_i32 = arith.constant 0 : i32
    %c0_i32_0 = arith.constant 0 : i32
    %c0_i32_1 = arith.constant 0 : i32
    return %c0_i32, %c0_i32_0 : i32, i32
  }
  func.func @transform_6(%arg0: i32, %arg1: i32) -> (i32, i32) {
    %c0_i32 = arith.constant 0 : i32
    %c0_i32_0 = arith.constant 0 : i32
    %c0_i32_1 = arith.constant 0 : i32
    return %c0_i32, %c0_i32_0 : i32, i32
  }
  func.func @transform_7(%arg0: i32, %arg1: i32) -> (i32, i32) {
    %c0_i32 = arith.constant 0 : i32
    %c0_i32_0 = arith.constant 0 : i32
    %c0_i32_1 = arith.constant 0 : i32
    return %c0_i32, %c0_i32_0 : i32, i32
  }
  func.func @transform_8(%arg0: i32, %arg1: i32) -> (i32, i32, i32) {
    %c0_i32 = arith.constant 0 : i32
    %c0_i32_0 = arith.constant 0 : i32
    return %arg0, %c0_i32, %arg1 : i32, i32, i32
  }
}

</mosaic_0001>

<llo_original>
// kernel: tpu_custom_call.1
$region0: #{tpu_custom_call.1}
  #allocation0 [shape = 'u32[]', space=smem, size = 0x4, offset = 0x4, fixed_abs, tag = 'smem constant byte address 0x4 - core index']
  #allocation1 [shape = 'u32[72,128]{1,0:T(1,128)}', space=vmem, size = 0x9000, scoped, tag = 'internal scratch']
  %s0 = inlined_call_operand.vmem [shape: f32[2,4,256], index: 0, kind: input, shape index: {}]
  %s1 = inlined_call_operand.vmem [shape: f32[2,4,1], index: 1, kind: input, shape index: {}]
  %s2 = inlined_call_operand.vmem [shape: f32[2,4,1], index: 2, kind: input, shape index: {}]
  %s3 = inlined_call_operand.vmem [shape: bf16[16,4], index: 3, kind: input, shape index: {}]
  %s4 = inlined_call_operand.vmem [shape: f32[16,1], index: 4, kind: input, shape index: {}]
  %s5 = inlined_call_operand.vmem [shape: bf16[4,16], index: 5, kind: input, shape index: {}]
  %s6 = inlined_call_operand.vmem [shape: f32[4,1], index: 6, kind: input, shape index: {}]
  %s7 = inlined_call_operand.vmem [shape: f32[4,1], index: 7, kind: input, shape index: {}]
  %s8 = inlined_call_operand.hbm [shape: f32[2,4,256], index: 8, kind: output, shape index: {}]
  %s9 = sld [smem:[#allocation0]]
  $region65: #{tpu_custom_call.1} parent=0
    _
  %s11 = ssub.s32 1, %s9
  %s12 = scalar_select 0, %s11, %s9
  $region1: #{tpu_custom_call.1} parent=0
    #allocation2 [shape = 'u8[8192]{0}', space=vmem, size = 0x2000, scoped, tag = 'output window, operand 0']
    #allocation3 [shape = 's32[2]{0}', space=sflag, size = 0x8, scoped, tag = 'scoped memory for tpu_custom_call.1']
    %13 = vsyncpa [#allocation3], 0
    %s14 = scalar_lea.sflag [#allocation3], 1
    %15 = vsyncpa %s14, 0
    loop: start=0, step=1, limit=4
    $region2: #{tpu_custom_call.1} parent=1 // loop_pre_header
      _
    $region3: #{tpu_custom_call.1} parent=1 // loop_header
      %s17 = sphi 0, %s21
      %p18 = scmp.ge.s32.totalorder %s17, 4
      %s24 = sphi 0, %s36
      %s25 = sphi 0, %s32
      %s26 = sphi 0, %s24
      %s27 = sphi 0, %s25
      %s28 = sphi 0, %s26
      %s29 = sphi 0, %s27
      %s41 = sphi 0, %s43
      %s44 = sphi 0, %s41
      %s45 = sphi 0, %s44
      %s61 = sphi 0, %s45
      %s67 = sphi 0, %s69
      %s70 = sphi 0, %s67
      %s71 = sphi 0, %s70
      %s87 = sphi 0, %s71
      %s93 = sphi 0, %s95
      %s96 = sphi 0, %s93
      %s97 = sphi 0, %s96
      %s113 = sphi 0, %s97
      %s117 = sphi 0, %s117
      %s119 = sphi 0, %s117
      %s120 = sphi 0, %s119
      %s134 = sphi 0, %s120
      %s138 = sphi 0, %s138
      %s140 = sphi 0, %s138
      %s141 = sphi 0, %s140
      %s155 = sphi 0, %s141
      %s159 = sphi 0, %s159
      %s161 = sphi 0, %s159
      %s162 = sphi 0, %s161
      %s176 = sphi 0, %s162
      %s180 = sphi 0, %s180
      %s182 = sphi 0, %s180
      %s183 = sphi 0, %s182
      %s197 = sphi 0, %s183
      %s201 = sphi 0, %s201
      %s203 = sphi 0, %s201
      %s204 = sphi 0, %s203
      %s218 = sphi 0, %s204
      %s226 = sphi 0, %s228
      %s229 = sphi 0, %s226
      %s230 = sphi 0, %s229
      %s246 = sphi 0, %s230
    $region4: #{tpu_custom_call.1} parent=1 // loop_header_branch
      %20 = sbr.rel (%p18) target = $region8
    $region5: #{tpu_custom_call.1} parent=1 // loop_body
      %s22 = ssub.s32 %s17, 1
      %s23 = ssub.s32 %s17, 2
      %s30 = sadd.s32 1, %s25
      %p31 = scmp.ge.s32.totalorder %s30, 1
      %s32 = scalar_select %p31, 0, %s30
      %s33 = sadd.s32 1, %s24
      %s34 = scalar_select %p31, %s33, %s24
      %p35 = scmp.ge.s32.totalorder %s34, 2
      %s36 = scalar_select %p35, 0, %s34
      %s37 = ssub.s32 %s24, %s36
      %s38 = ssub.s32 %s25, %s32
      %s39 = sor.u32 %s37, %s38
      %p40 = scmp.eq.s32.totalorder %s39, 0
      %s42 = sadd.s32 %s41, 1
      %s43 = scalar_select %p40, %s41, %s42
      %p46 = pneg %p40
      %p47 = scmp.eq.s32.totalorder %s17, 1
      %p48 = por %p46, %p47
      %p49 = scmp.ne.s32.totalorder %s41, %s44
      %p50 = scmp.eq.s32.totalorder %s17, 0
      %p51 = por %p49, %p50
      %p52 = scmp.ne.s32.totalorder %s41, %s44
      %p53 = scmp.eq.s32.totalorder %s22, 1
      %p54 = por %p52, %p53
      %p55 = scmp.ne.s32.totalorder %s44, %s45
      %p56 = scmp.eq.s32.totalorder %s22, 0
      %p57 = por %p55, %p56
      %p58 = scmp.ne.s32.totalorder %s44, %s45
      %p59 = scmp.eq.s32.totalorder %s23, 1
      %p60 = por %p58, %p59
      %p62 = scmp.ne.s32.totalorder %s45, %s61
      %p63 = scmp.eq.s32.totalorder %s23, 0
      %p64 = por %p62, %p63
      %s65 = ssub.s32 %s24, %s36
      %p66 = scmp.eq.s32.totalorder %s65, 0
      %s68 = sadd.s32 %s67, 1
      %s69 = scalar_select %p66, %s67, %s68
      %p72 = pneg %p66
      %p73 = scmp.eq.s32.totalorder %s17, 1
      %p74 = por %p72, %p73
      %p75 = scmp.ne.s32.totalorder %s67, %s70
      %p76 = scmp.eq.s32.totalorder %s17, 0
      %p77 = por %p75, %p76
      %p78 = scmp.ne.s32.totalorder %s67, %s70
      %p79 = scmp.eq.s32.totalorder %s22, 1
      %p80 = por %p78, %p79
      %p81 = scmp.ne.s32.totalorder %s70, %s71
      %p82 = scmp.eq.s32.totalorder %s22, 0
      %p83 = por %p81, %p82
      %p84 = scmp.ne.s32.totalorder %s70, %s71
      %p85 = scmp.eq.s32.totalorder %s23, 1
      %p86 = por %p84, %p85
      %p88 = scmp.ne.s32.totalorder %s71, %s87
      %p89 = scmp.eq.s32.totalorder %s23, 0
      %p90 = por %p88, %p89
      %s91 = ssub.s32 %s24, %s36
      %p92 = scmp.eq.s32.totalorder %s91, 0
      %s94 = sadd.s32 %s93, 1
      %s95 = scalar_select %p92, %s93, %s94
      %p98 = pneg %p92
      %p99 = scmp.eq.s32.totalorder %s17, 1
      %p100 = por %p98, %p99
      %p101 = scmp.ne.s32.totalorder %s93, %s96
      %p102 = scmp.eq.s32.totalorder %s17, 0
      %p103 = por %p101, %p102
      %p104 = scmp.ne.s32.totalorder %s93, %s96
      %p105 = scmp.eq.s32.totalorder %s22, 1
      %p106 = por %p104, %p105
      %p107 = scmp.ne.s32.totalorder %s96, %s97
      %p108 = scmp.eq.s32.totalorder %s22, 0
      %p109 = por %p107, %p108
      %p110 = scmp.ne.s32.totalorder %s96, %s97
      %p111 = scmp.eq.s32.totalorder %s23, 1
      %p112 = por %p110, %p111
      %p114 = scmp.ne.s32.totalorder %s97, %s113
      %p115 = scmp.eq.s32.totalorder %s23, 0
      %p116 = por %p114, %p115
      %s118 = sadd.s32 %s117, 1
      %p121 = scmp.eq.s32.totalorder %s17, 1
      %p122 = scmp.ne.s32.totalorder %s117, %s119
      %p123 = scmp.eq.s32.totalorder %s17, 0
      %p124 = por %p122, %p123
      %p125 = scmp.ne.s32.totalorder %s117, %s119
      %p126 = scmp.eq.s32.totalorder %s22, 1
      %p127 = por %p125, %p126
      %p128 = scmp.ne.s32.totalorder %s119, %s120
      %p129 = scmp.eq.s32.totalorder %s22, 0
      %p130 = por %p128, %p129
      %p131 = scmp.ne.s32.totalorder %s119, %s120
      %p132 = scmp.eq.s32.totalorder %s23, 1
      %p133 = por %p131, %p132
      %p135 = scmp.ne.s32.totalorder %s120, %s134
      %p136 = scmp.eq.s32.totalorder %s23, 0
      %p137 = por %p135, %p136
      %s139 = sadd.s32 %s138, 1
      %p142 = scmp.eq.s32.totalorder %s17, 1
      %p143 = scmp.ne.s32.totalorder %s138, %s140
      %p144 = scmp.eq.s32.totalorder %s17, 0
      %p145 = por %p143, %p144
      %p146 = scmp.ne.s32.totalorder %s138, %s140
      %p147 = scmp.eq.s32.totalorder %s22, 1
      %p148 = por %p146, %p147
      %p149 = scmp.ne.s32.totalorder %s140, %s141
      %p150 = scmp.eq.s32.totalorder %s22, 0
      %p151 = por %p149, %p150
      %p152 = scmp.ne.s32.totalorder %s140, %s141
      %p153 = scmp.eq.s32.totalorder %s23, 1
      %p154 = por %p152, %p153
      %p156 = scmp.ne.s32.totalorder %s141, %s155
      %p157 = scmp.eq.s32.totalorder %s23, 0
      %p158 = por %p156, %p157
      %s160 = sadd.s32 %s159, 1
      %p163 = scmp.eq.s32.totalorder %s17, 1
      %p164 = scmp.ne.s32.totalorder %s159, %s161
      %p165 = scmp.eq.s32.totalorder %s17, 0
      %p166 = por %p164, %p165
      %p167 = scmp.ne.s32.totalorder %s159, %s161
      %p168 = scmp.eq.s32.totalorder %s22, 1
      %p169 = por %p167, %p168
      %p170 = scmp.ne.s32.totalorder %s161, %s162
      %p171 = scmp.eq.s32.totalorder %s22, 0
      %p172 = por %p170, %p171
      %p173 = scmp.ne.s32.totalorder %s161, %s162
      %p174 = scmp.eq.s32.totalorder %s23, 1
      %p175 = por %p173, %p174
      %p177 = scmp.ne.s32.totalorder %s162, %s176
      %p178 = scmp.eq.s32.totalorder %s23, 0
      %p179 = por %p177, %p178
      %s181 = sadd.s32 %s180, 1
      %p184 = scmp.eq.s32.totalorder %s17, 1
      %p185 = scmp.ne.s32.totalorder %s180, %s182
      %p186 = scmp.eq.s32.totalorder %s17, 0
      %p187 = por %p185, %p186
      %p188 = scmp.ne.s32.totalorder %s180, %s182
      %p189 = scmp.eq.s32.totalorder %s22, 1
      %p190 = por %p188, %p189
      %p191 = scmp.ne.s32.totalorder %s182, %s183
      %p192 = scmp.eq.s32.totalorder %s22, 0
      %p193 = por %p191, %p192
      %p194 = scmp.ne.s32.totalorder %s182, %s183
      %p195 = scmp.eq.s32.totalorder %s23, 1
      %p196 = por %p194, %p195
      %p198 = scmp.ne.s32.totalorder %s183, %s197
      %p199 = scmp.eq.s32.totalorder %s23, 0
      %p200 = por %p198, %p199
      %s202 = sadd.s32 %s201, 1
      %p205 = scmp.eq.s32.totalorder %s17, 1
      %p206 = scmp.ne.s32.totalorder %s201, %s203
      %p207 = scmp.eq.s32.totalorder %s17, 0
      %p208 = por %p206, %p207
      %p209 = scmp.ne.s32.totalorder %s201, %s203
      %p210 = scmp.eq.s32.totalorder %s22, 1
      %p211 = por %p209, %p210
      %p212 = scmp.ne.s32.totalorder %s203, %s204
      %p213 = scmp.eq.s32.totalorder %s22, 0
      %p214 = por %p212, %p213
      %p215 = scmp.ne.s32.totalorder %s203, %s204
      %p216 = scmp.eq.s32.totalorder %s23, 1
      %p217 = por %p215, %p216
      %p219 = scmp.ne.s32.totalorder %s204, %s218
      %p220 = scmp.eq.s32.totalorder %s23, 0
      %p221 = por %p219, %p220
      %s222 = ssub.s32 %s24, %s36
      %s223 = ssub.s32 %s25, %s32
      %s224 = sor.u32 %s222, %s223
      %p225 = scmp.eq.s32.totalorder %s224, 0
      %s227 = sadd.s32 %s226, 1
      %s228 = scalar_select %p225, %s226, %s227
      %p231 = pneg %p225
      %p232 = scmp.eq.s32.totalorder %s17, 1
      %p233 = por %p231, %p232
      %p234 = scmp.ne.s32.totalorder %s226, %s229
      %p235 = scmp.eq.s32.totalorder %s17, 0
      %p236 = por %p234, %p235
      %p237 = scmp.ne.s32.totalorder %s226, %s229
      %p238 = scmp.eq.s32.totalorder %s22, 1
      %p239 = por %p237, %p238
      %p240 = scmp.ne.s32.totalorder %s229, %s230
      %p241 = scmp.eq.s32.totalorder %s22, 0
      %p242 = por %p240, %p241
      %p243 = scmp.ne.s32.totalorder %s229, %s230
      %p244 = scmp.eq.s32.totalorder %s23, 1
      %p245 = por %p243, %p244
      %p247 = scmp.ne.s32.totalorder %s230, %s246
      %p248 = scmp.eq.s32.totalorder %s23, 0
      %p249 = por %p247, %p248
      %p250 = scmp.le.s32.totalorder 1, %s17
      %p251 = scmp.lt.s32.totalorder %s17, 3
      %p252 = pnand %p250, %p251
      %p253 = pneg %p252
      // Predicated region
      $region9: #{tpu_custom_call.1} parent=5 // pred_check
        _
      $region10: #{tpu_custom_call.1} parent=5 // pred_check_branch
        %255 = sbr.rel (%p252) target = $region12
      $region11: #{tpu_custom_call.1} parent=5 // pred_region
        %s256 = ssub.s32 %s17, 1
        // Predicated region
        $region13: #{tpu_custom_call.1} parent=11 // pred_check
          %p257 = pneg %p130
        $region14: #{tpu_custom_call.1} parent=11 // pred_check_branch
          %259 = sbr.rel (%p257) target = $region16
        $region15: #{tpu_custom_call.1} parent=11 // pred_region
          _
        $region16: #{tpu_custom_call.1} parent=11 // pred_fallthru
          _
        // Predicated region
        $region17: #{tpu_custom_call.1} parent=11 // pred_check
          %p260 = pneg %p151
        $region18: #{tpu_custom_call.1} parent=11 // pred_check_branch
          %262 = sbr.rel (%p260) target = $region20
        $region19: #{tpu_custom_call.1} parent=11 // pred_region
          _
        $region20: #{tpu_custom_call.1} parent=11 // pred_fallthru
          _
        // Predicated region
        $region21: #{tpu_custom_call.1} parent=11 // pred_check
          %p263 = pneg %p172
        $region22: #{tpu_custom_call.1} parent=11 // pred_check_branch
          %265 = sbr.rel (%p263) target = $region24
        $region23: #{tpu_custom_call.1} parent=11 // pred_region
          _
        $region24: #{tpu_custom_call.1} parent=11 // pred_fallthru
          _
        // Predicated region
        $region25: #{tpu_custom_call.1} parent=11 // pred_check
          %p266 = pneg %p193
        $region26: #{tpu_custom_call.1} parent=11 // pred_check_branch
          %268 = sbr.rel (%p266) target = $region28
        $region27: #{tpu_custom_call.1} parent=11 // pred_region
          _
        $region28: #{tpu_custom_call.1} parent=11 // pred_fallthru
          _
        // Predicated region
        $region29: #{tpu_custom_call.1} parent=11 // pred_check
          %p269 = pneg %p214
        $region30: #{tpu_custom_call.1} parent=11 // pred_check_branch
          %271 = sbr.rel (%p269) target = $region32
        $region31: #{tpu_custom_call.1} parent=11 // pred_region
          _
        $region32: #{tpu_custom_call.1} parent=11 // pred_fallthru
          _
      $region12: #{tpu_custom_call.1} parent=5 // pred_fallthru
        _
      %p272 = scmp.lt.s32.totalorder %s17, 2
      // Predicated region
      $region33: #{tpu_custom_call.1} parent=5 // pred_check
        %p273 = pneg %p272
      $region34: #{tpu_custom_call.1} parent=5 // pred_check_branch
        %275 = sbr.rel (%p273) target = $region36
      $region35: #{tpu_custom_call.1} parent=5 // pred_region
        // Predicated region
        $region37: #{tpu_custom_call.1} parent=35 // pred_check
          %p276 = pneg %p51
        $region38: #{tpu_custom_call.1} parent=35 // pred_check_branch
          %278 = sbr.rel (%p276) target = $region40
        $region39: #{tpu_custom_call.1} parent=35 // pred_region
          %s279 = smul.u32 2, %s25
          %p280 = scmp.lt.s32.totalorder %s24, 1
          %s281 = scalar_select %p280, %s24, 1
          %p282 = scmp.lt.s32.totalorder %s279, 1
          %s283 = scalar_select %p282, %s279, 1
          %s284 = smul.addr %s281, 2
          %s285 = sadd.s32 %s283, %s284
          %s286 = smul.addr %s285, 4
          %s287 = scalar_lea.vmem %s0, %s286
          %s288 = smul.u32 2, %s25
        $region40: #{tpu_custom_call.1} parent=35 // pred_fallthru
          _
        // Predicated region
        $region41: #{tpu_custom_call.1} parent=35 // pred_check
          %p289 = pneg %p77
        $region42: #{tpu_custom_call.1} parent=35 // pred_check_branch
          %291 = sbr.rel (%p289) target = $region44
        $region43: #{tpu_custom_call.1} parent=35 // pred_region
          %p292 = scmp.lt.s32.totalorder %s24, 1
          %s293 = scalar_select %p292, %s24, 1
          %s294 = smul.addr %s293, 4
          %s295 = scalar_lea.vmem %s1, %s294
        $region44: #{tpu_custom_call.1} parent=35 // pred_fallthru
          _
        // Predicated region
        $region45: #{tpu_custom_call.1} parent=35 // pred_check
          %p296 = pneg %p103
        $region46: #{tpu_custom_call.1} parent=35 // pred_check_branch
          %298 = sbr.rel (%p296) target = $region48
        $region47: #{tpu_custom_call.1} parent=35 // pred_region
          %p299 = scmp.lt.s32.totalorder %s24, 1
          %s300 = scalar_select %p299, %s24, 1
          %s301 = smul.addr %s300, 4
          %s302 = scalar_lea.vmem %s2, %s301
        $region48: #{tpu_custom_call.1} parent=35 // pred_fallthru
          _
      $region36: #{tpu_custom_call.1} parent=5 // pred_fallthru
        _
      %p303 = scmp.le.s32.totalorder 1, %s17
      %p304 = scmp.lt.s32.totalorder %s17, 3
      %p305 = pnand %p303, %p304
      %p306 = pneg %p305
      // Predicated region
      $region49: #{tpu_custom_call.1} parent=5 // pred_check
        _
      $region50: #{tpu_custom_call.1} parent=5 // pred_check_branch
        %308 = sbr.rel (%p305) target = $region52
      $region51: #{tpu_custom_call.1} parent=5 // pred_region
        %s309 = ssub.s32 %s17, 1
        %s310 = smul.u32 2, %s27
        %p311 = scmp.lt.s32.totalorder %s26, 1
        %s312 = scalar_select %p311, %s26, 1
        %p313 = scmp.lt.s32.totalorder %s310, 1
        %s314 = scalar_select %p313, %s310, 1
        %s315 = smul.addr %s312, 2
        %s316 = sadd.s32 %s314, %s315
        %s317 = smul.addr %s316, 4
        %s318 = scalar_lea.vmem %s0, %s317
        %p319 = pneg %p57
        %p320 = pneg %p54
        %p321 = scmp.lt.s32.totalorder %s26, 1
        %s322 = scalar_select %p321, %s26, 1
        %s323 = smul.addr %s322, 4
        %s324 = scalar_lea.vmem %s1, %s323
        %p325 = pneg %p83
        %p326 = pneg %p80
        %p327 = scmp.lt.s32.totalorder %s26, 1
        %s328 = scalar_select %p327, %s26, 1
        %s329 = smul.addr %s328, 4
        %s330 = scalar_lea.vmem %s2, %s329
        %p331 = pneg %p109
        %p332 = pneg %p106
        %p333 = pneg %p130
        %p334 = pneg %p127
        %p335 = pneg %p151
        %p336 = pneg %p148
        %p337 = pneg %p172
        %p338 = pneg %p169
        %p339 = pneg %p193
        %p340 = pneg %p190
        %p341 = pneg %p214
        %p342 = pneg %p211
        %p343 = pneg %p242
        %p344 = pneg %p239
        %s345 = sand.u32 %s229, 1
        %s346 = scalar_lea.sflag [#allocation3], %s345
        %s347 = sand.u32 %s229, 1
        %s348 = smul.addr %s347, 8
        %s349 = scalar_lea.vmem [#allocation2], %s348
        %s350 = smul.u32 2, %s27
        %p351 = scmp.lt.s32.totalorder %s26, 1
        %s352 = scalar_select %p351, %s26, 1
        %p353 = scmp.lt.s32.totalorder %s350, 1
        %s354 = scalar_select %p353, %s350, 1
        %s355 = smul.addr %s352, 2
        %s356 = sadd.s32 %s354, %s355
        %s357 = smul.addr %s356, 4
        %s358 = scalar_lea.vmem %s0, %s357
        %s359 = smul.u32 2, %s27
        %p360 = scmp.lt.s32.totalorder %s26, 1
        %s361 = scalar_select %p360, %s26, 1
        %s362 = smul.addr %s361, 4
        %s363 = scalar_lea.vmem %s1, %s362
        %p364 = scmp.lt.s32.totalorder %s26, 1
        %s365 = scalar_select %p364, %s26, 1
        %s366 = smul.addr %s365, 4
        %s367 = scalar_lea.vmem %s2, %s366
        %s368 = smul.u32 2, %s27
        %v370 = vld [vmem:[%s358] sm:$0xff]
        %v371 = vld [vmem:[%s363] sm:$0xf]
        %373 = vset.pattern.permute.xlu0 0
        %374 = vperm.xlu0 %373, %v371
        %v375 = vpop.permute.xlu0 %374
        %v377 = vunpack.c.l.s4 839922192
        %v378 = vunpack.c.0.s8 %v377
        %v379 = vperm.slane %v375, %v378
        %v381 = vmul.f32 %v370, %v379
        %v382 = vld [vmem:[%s367] sm:$0xf]
        %384 = vset.pattern.permute.xlu0 0
        %385 = vperm.xlu0 %384, %v382
        %v386 = vpop.permute.xlu0 %385
        %v388 = vunpack.c.l.s4 839922192
        %v389 = vunpack.c.0.s8 %v388
        %v390 = vperm.slane %v386, %v389
        %v392 = vadd.f32 %v381, %v390
        %v393 = vld [vmem:[%s3] sm:$0xf]
        %v394 = vld [vmem:[%s3 + $0x4] sm:$0xf]
        %396 = vst [vmem:[#allocation1] ss:$2 sm:$0xff] %v392
        %v397 = vld.sshfl [vmem:[#allocation1] sm:$0xff pattern:$0x75316420]
        %v398 = vld.sshfl [vmem:[#allocation1 + $0x8] sm:$0xff pattern:$0x75316420]
        %v401 = vpack.c.bf16 %v397, %v397
        %v402 = vpack.c.bf16 %v398, %v398
        %v403 = vld [vmem:[%s4] sm:$0xff]
        %v404 = vld [vmem:[%s4 + $0x8] sm:$0xff]
        %406 = vset.pattern.permute.xlu0 0
        %407 = vperm.xlu0 %406, %v403
        %v408 = vpop.permute.xlu0 %407
        %411 = vset.pattern.permute.xlu0 0
        %412 = vperm.xlu0 %411, %v404
        %v413 = vpop.permute.xlu0 %412
        %v417 = vunpack.c.l.b16 %v393
        %v418 = vunpack.c.l.b16 %v394
        %v419 = vpack.c.b16 %v418, %v417
        %vm420 = vcmask 31744
        %v422 = vsel %vm420, %v419, 0
        %vm424 = vcmask 1041408
        %v426 = vsel %vm424, %v401, 0
        %v429 = vsel %vm424, %v402, 0
        %431 = vmatpush.bf16.msra.mxu0 0
        %432 = vmatpush.bf16.msra.mxu0 0
        %433 = vmatpush.bf16.msra.mxu0 0
        %434 = vmatpush.bf16.msra.mxu0 0
        %435 = vmatpush.bf16.msra.mxu0 0
        %436 = vmatpush.bf16.msra.mxu0 0
        %437 = vmatpush.bf16.msra.mxu0 0
        %438 = vmatpush.bf16.msra.mxu0 %v426
        %439 = vmatmul.bf16.gmra.mxu0 %v422
        %v440 = vpop.f32.mrf.mxu0
        %v441 = vadd.f32 %v408, %v440
        %v442 = vpop.f32.mrf.mxu0
        %v443 = vadd.f32 %v413, %v442
        %444 = vdwg.mxu0
        %445 = vmatpush.bf16.msra.mxu0 0
        %446 = vmatpush.bf16.msra.mxu0 0
        %447 = vmatpush.bf16.msra.mxu0 0
        %448 = vmatpush.bf16.msra.mxu0 0
        %449 = vmatpush.bf16.msra.mxu0 0
        %450 = vmatpush.bf16.msra.mxu0 0
        %451 = vmatpush.bf16.msra.mxu0 0
        %452 = vmatpush.bf16.msra.mxu0 %v429
        %453 = vmatmul.bf16.gmra.mxu0 %v422
        %v454 = vpop.f32.mrf.mxu0
        %v455 = vadd.f32 %v408, %v454
        %v456 = vpop.f32.mrf.mxu0
        %v457 = vadd.f32 %v413, %v456
        %458 = vdwg.mxu0
        %v459 = vmul.f32 %v441, 0.5
        %v460 = vmul.f32 %v455, 0.5
        %v461 = vmul.f32 %v443, 0.5
        %v462 = vmul.f32 %v457, 0.5
        %v463 = vmul.f32 %v441, 0.044715
        %v464 = vmul.f32 %v455, 0.044715
        %v465 = vmul.f32 %v443, 0.044715
        %v466 = vmul.f32 %v457, 0.044715
        %v467 = vmul.f32 %v463, %v441
        %v468 = vmul.f32 %v464, %v455
        %v469 = vmul.f32 %v465, %v443
        %v470 = vmul.f32 %v466, %v457
        %v471 = vmul.f32 %v467, %v441
        %v472 = vmul.f32 %v468, %v455
        %v473 = vmul.f32 %v469, %v443
        %v474 = vmul.f32 %v470, %v457
        %v475 = vadd.f32 %v441, %v471
        %v476 = vadd.f32 %v455, %v472
        %v477 = vadd.f32 %v443, %v473
        %v478 = vadd.f32 %v457, %v474
        %v479 = vmul.f32 %v475, 0.7978846
        %v480 = vmul.f32 %v476, 0.7978846
        %v481 = vmul.f32 %v477, 0.7978846
        %v482 = vmul.f32 %v478, 0.7978846
        %v483 = vtanh.pop %v479
        %v484 = vtanh.pop %v480
        %v485 = vtanh.pop %v481
        %v486 = vtanh.pop %v482
        %v487 = vadd.f32 %v483, 1.0
        %v488 = vadd.f32 %v484, 1.0
        %v489 = vadd.f32 %v485, 1.0
        %v490 = vadd.f32 %v486, 1.0
        %v491 = vmul.f32 %v459, %v487
        %v492 = vmul.f32 %v460, %v488
        %v493 = vmul.f32 %v461, %v489
        %v494 = vmul.f32 %v462, %v490
        %v495 = vld [vmem:[%s5] sm:$0x3]
        %v496 = vpack.c.bf16 %v493, %v491
        %v497 = vpack.c.bf16 %v494, %v492
        %v498 = vld [vmem:[%s6] sm:$0xf]
        %500 = vset.pattern.permute.xlu0 0
        %501 = vperm.xlu0 %500, %v498
        %v502 = vpop.permute.xlu0 %501
        %vm504 = vcmask 130048
        %v506 = vsel %vm504, %v495, 0
        %508 = vmatpush.bf16.msra.mxu0 0
        %509 = vmatpush.bf16.msra.mxu0 0
        %510 = vmatpush.bf16.msra.mxu0 0
        %511 = vmatpush.bf16.msra.mxu0 0
        %512 = vmatpush.bf16.msra.mxu0 0
        %513 = vmatpush.bf16.msra.mxu0 0
        %514 = vmatpush.bf16.msra.mxu0 0
        %515 = vmatpush.bf16.msra.mxu0 %v496
        %516 = vmatmul.bf16.gmra.mxu0 %v506
        %v517 = vpop.f32.mrf.mxu0
        %v518 = vadd.f32 %v502, %v517
        %v519 = vpop.f32.mrf.mxu0
        %520 = vdwg.mxu0
        %521 = vmatpush.bf16.msra.mxu0 0
        %522 = vmatpush.bf16.msra.mxu0 0
        %523 = vmatpush.bf16.msra.mxu0 0
        %524 = vmatpush.bf16.msra.mxu0 0
        %525 = vmatpush.bf16.msra.mxu0 0
        %526 = vmatpush.bf16.msra.mxu0 0
        %527 = vmatpush.bf16.msra.mxu0 0
        %528 = vmatpush.bf16.msra.mxu0 %v497
        %529 = vmatmul.bf16.gmra.mxu0 %v506
        %v530 = vpop.f32.mrf.mxu0
        %v531 = vadd.f32 %v502, %v530
        %v532 = vpop.f32.mrf.mxu0
        %533 = vdwg.mxu0
        %v534 = vmul.f32 %v518, 0.5
        %v535 = vmul.f32 %v531, 0.5
        %v536 = vmul.f32 %v518, 0.044715
        %v537 = vmul.f32 %v531, 0.044715
        %v538 = vmul.f32 %v536, %v518
        %v539 = vmul.f32 %v537, %v531
        %v540 = vmul.f32 %v538, %v518
        %v541 = vmul.f32 %v539, %v531
        %v542 = vadd.f32 %v518, %v540
        %v543 = vadd.f32 %v531, %v541
        %v544 = vmul.f32 %v542, 0.7978846
        %v545 = vmul.f32 %v543, 0.7978846
        %v546 = vtanh.pop %v544
        %v547 = vtanh.pop %v545
        %v548 = vadd.f32 %v546, 1.0
        %v549 = vadd.f32 %v547, 1.0
        %v550 = vmul.f32 %v534, %v548
        %v551 = vmul.f32 %v535, %v549
        %v552 = vld [vmem:[%s7] sm:$0xf]
        %554 = vset.pattern.permute.xlu0 0
        %555 = vperm.xlu0 %554, %v552
        %v556 = vpop.permute.xlu0 %555
        %v558 = vmul.f32 %v550, %v556
        %v559 = vmul.f32 %v551, %v556
        %v562 = vrot.slane %v559, 4
        %vm563 = vcmask 1043456
        %v564 = vsel %vm563, %v558, %v562
        %566 = vst [vmem:[%s349] sm:$0xff] %v564
        %s567 = sand.u32 %s229, 1
        %s568 = scalar_lea.sflag [#allocation3], %s567
        %s569 = sand.u32 %s229, 1
        %s570 = smul.addr %s569, 8
        %s571 = scalar_lea.vmem [#allocation2], %s570
        // Predicated region
        $region53: #{tpu_custom_call.1} parent=51 // pred_check
          %p572 = pneg %p239
        $region54: #{tpu_custom_call.1} parent=51 // pred_check_branch
          %574 = sbr.rel (%p572) target = $region56
        $region55: #{tpu_custom_call.1} parent=51 // pred_region
          %s575 = smul.u32 2, %s27
          %577 = vsyncadd %s568, 0
          %s578 = smul.addr %s26, 2
          %s579 = sadd.s32 %s575, %s578
          %s580 = smul.addr %s579, 4
          %s581 = scalar_lea.hbm %s8, %s580
          %s583 = sshll.u32 %s571, 4
          %s584 = int_to_ptr.vmem [resolvable:$true] %s583
          %s585 = sshll.u32 %s581, 4
          %s586 = int_to_ptr.hbm [resolvable:$true] %s585
          %588 = dma.vmem_to_hbm [thread:$0]  %s584, 128, %s586, %s568
        $region56: #{tpu_custom_call.1} parent=51 // pred_fallthru
          _
      $region52: #{tpu_custom_call.1} parent=5 // pred_fallthru
        _
      %p589 = scmp.le.s32.totalorder 2, %s17
      // Predicated region
      $region57: #{tpu_custom_call.1} parent=5 // pred_check
        %p590 = pneg %p589
      $region58: #{tpu_custom_call.1} parent=5 // pred_check_branch
        %592 = sbr.rel (%p590) target = $region60
      $region59: #{tpu_custom_call.1} parent=5 // pred_region
        %s593 = ssub.s32 %s17, 2
        // Predicated region
        $region61: #{tpu_custom_call.1} parent=59 // pred_check
          %p594 = pneg %p245
        $region62: #{tpu_custom_call.1} parent=59 // pred_check_branch
          %596 = sbr.rel (%p594) target = $region64
        $region63: #{tpu_custom_call.1} parent=59 // pred_region
          %s597 = sand.u32 %s230, 1
          %s598 = scalar_lea.sflag [#allocation3], %s597
          %s599 = sand.u32 %s230, 1
          %s600 = smul.addr %s599, 8
          %s601 = scalar_lea.vmem [#allocation2], %s600
          %603 = dma.done %s598, 128
        $region64: #{tpu_custom_call.1} parent=59 // pred_fallthru
          _
      $region60: #{tpu_custom_call.1} parent=5 // pred_fallthru
        _
    $region6: #{tpu_custom_call.1} parent=1 // loop_footer
      %s21 = sadd.s32 1, %s17
    $region7: #{tpu_custom_call.1} parent=1 // loop_footer_branch
      %16 = sbr.rel target = $region3
    $region8: #{tpu_custom_call.1} parent=1 // loop_exit
      _
    %604 = vsyncpa [#allocation3], 1
    %s605 = scalar_lea.sflag [#allocation3], 1
    %606 = vsyncpa %s605, 1

</llo_original>
